<compile_context>
chip_gen: v7x
topology: tpu7x:2x2x1
jax: 0.10.0
libtpu: 0.0.40
codegen_flags: <defaults>
</compile_context>

<pallas_src>
import jax
import jax.numpy as jnp
import numpy as np
from jax.experimental import pallas as pl
from jax.experimental.pallas import tpu as pltpu


NUM_FEATS = 25
NUM_CLASSES = 7
OUT_PAD = 128    # class dim padded 7 -> 128 for a lane-dense (unmasked) output store


def _llds_kernel(feat_ref,            # VMEM (TB, T, 25) f32 (or bf16)
                 len_ref,             # VMEM (TB, 1) int32   valid frame counts
                 w1_ref, b1_ref,      # VMEM (25, D1) bf16 (norm folded), (1, D1) f32
                 w2_ref, b2_ref,      # VMEM (D1, D2) bf16, (1, D2) f32
                 wo_ref, bo_ref,      # VMEM (D2, OUT_PAD) bf16, (1, OUT_PAD) f32
                 out_ref):            # VMEM (TB, OUT_PAD) f32
    TB, T, F = feat_ref.shape
    D2 = w2_ref.shape[1]

    # Flatten the batch block so the MXU sees M = TB*T rows per matmul.
    # T is a multiple of 8 (host-side pad), so this is a pure sublane merge.
    feat = feat_ref[...].reshape(TB * T, F).astype(jnp.bfloat16)

    # conv1 (1x25 kernel) == per-frame linear 25 -> D1 with the speaker
    # normalization folded into (W1', b1'); ReLU.  bf16 in, f32 accumulation.
    h1 = jnp.maximum(
        jnp.dot(feat, w1_ref[...], preferred_element_type=jnp.float32)
        + b1_ref[...], 0.0)
    # conv2 (1xD1 kernel) == per-frame linear D1 -> D2, ReLU.
    h2 = jnp.maximum(
        jnp.dot(h1.astype(jnp.bfloat16), w2_ref[...],
                preferred_element_type=jnp.float32)
        + b2_ref[...], 0.0)

    # Masked mean over valid frames: 0/1 mask multiply + sum over T (XLU),
    # then scale by 1/len (EUP reciprocal, guarded against len == 0).
    h2r = h2.reshape(TB, T, D2)
    tidx = jax.lax.broadcasted_iota(jnp.int32, (TB, T, D2), 1)
    lens = len_ref[...]                                            # (TB, 1) int32
    mask = (tidx < lens.reshape(TB, 1, 1)).astype(jnp.float32)     # (TB, T, D2)
    summed = jnp.sum(h2r * mask, axis=1)                           # (TB, D2)
    lenf = lens.astype(jnp.float32)
    inv = jnp.where(lenf > 0.0,
                    pl.reciprocal(jnp.maximum(lenf, 1.0), approx=False),
                    0.0)                                           # (TB, 1)
    pooled = summed * inv                                          # (TB, D2)

    # out_layer (D2 -> 7, zero-padded to OUT_PAD lanes).  Dropout == identity (eval).
    out_ref[...] = jnp.dot(pooled.astype(jnp.bfloat16), wo_ref[...],
                           preferred_element_type=jnp.float32) + bo_ref[...]


def prepare_params(raw_params):
    """Fold the global normalization into layer 1 and cast/pad params to kernel layout."""
    mean, istd, w1t, b1, w2t, b2, wot, bo = raw_params
    d2 = w2t.shape[1]
    # (x - mean) * istd @ W1 + b1  ==  x @ (diag(istd) @ W1) + (b1 - (mean*istd) @ W1)
    w1_fold = w1t * istd.reshape(NUM_FEATS, 1)                 # (25, D1) f32
    b1_fold = b1 - (mean * istd) @ w1t                         # (1, D1)  f32
    w1p = w1_fold.astype(jnp.bfloat16)
    b1p = b1_fold.astype(jnp.float32)
    w2p = w2t.astype(jnp.bfloat16)
    b2p = b2.astype(jnp.float32)
    wop = (jnp.zeros((d2, OUT_PAD), jnp.float32)
           .at[:, :NUM_CLASSES].set(wot)).astype(jnp.bfloat16)
    bop = jnp.zeros((1, OUT_PAD), jnp.float32).at[:, :NUM_CLASSES].set(bo)
    return w1p, b1p, w2p, b2p, wop, bop


def llds_forward(features, lengths, raw_params, *, tb=8):
    """features: (B, T, 25) f32/bf16; lengths: (B,) int; returns (B, 7) f32.

    tb: sequences per grid step.  Keep nb = ceil(B/tb) >= 2 on v7x (two TCs);
    raise tb so tb*T >= 256 on v6e/v7x when B allows.
    """
    B, T, F = features.shape
    assert F == NUM_FEATS
    w1p, b1p, w2p, b2p, wop, bop = prepare_params(raw_params)
    d1 = w1p.shape[1]
    d2 = w2p.shape[1]

    lengths = lengths.astype(jnp.int32)

    # Pad T to a multiple of 8 once so the in-kernel (TB,T,F)->(TB*T,F) reshape is a
    # pure sublane merge; padded frames are excluded by the length mask.
    tpad = (-T) % 8
    if tpad:
        features = jnp.pad(features, ((0, 0), (0, tpad), (0, 0)))
    t_eff = T + tpad

    # Batch blocking (cheap pad only when tb does not divide B).
    nb = pl.cdiv(B, tb)
    b_pad = nb * tb
    if b_pad != B:
        features = jnp.pad(features, ((0, b_pad - B), (0, 0), (0, 0)))
        lengths = jnp.pad(lengths, (0, b_pad - B))
    len2d = lengths.reshape(b_pad, 1)

    grid_spec = pltpu.PrefetchScalarGridSpec(
        num_scalar_prefetch=0,
        grid=(nb,),
        in_specs=[
            pl.BlockSpec((tb, t_eff, F), lambda i: (i, 0, 0)),   # raw features (no 25->32 pad)
            pl.BlockSpec((tb, 1), lambda i: (i, 0)),             # lengths
            pl.BlockSpec((F, d1), lambda i: (0, 0)),             # W1' (norm folded, bf16)
            pl.BlockSpec((1, d1), lambda i: (0, 0)),             # b1'
            pl.BlockSpec((d1, d2), lambda i: (0, 0)),            # W2 (bf16)
            pl.BlockSpec((1, d2), lambda i: (0, 0)),             # b2
            pl.BlockSpec((d2, OUT_PAD), lambda i: (0, 0)),       # Wout (bf16, lane-padded)
            pl.BlockSpec((1, OUT_PAD), lambda i: (0, 0)),        # bout (lane-padded)
        ],
        out_specs=pl.BlockSpec((tb, OUT_PAD), lambda i: (i, 0)),
    )

    out = pl.pallas_call(
        _llds_kernel,
        out_shape=jax.ShapeDtypeStruct((b_pad, OUT_PAD), jnp.float32),
        grid_spec=grid_spec,
        compiler_params=pltpu.CompilerParams(dimension_semantics=("parallel",)),
    )(features, len2d, w1p, b1p, w2p, b2p, wop, bop)
    return out[:B, :NUM_CLASSES]


def _safe_inv(lengths):
    lf = lengths.astype(jnp.float32)
    return jnp.where(lf > 0.0, 1.0 / jnp.maximum(lf, 1.0), 0.0)


def _reference_kernel_numerics(features, lengths, prepared):
    """Pure-JAX reference mirroring the kernel numerics (folded norm, bf16 matmuls)."""
    w1p, b1p, w2p, b2p, wop, bop = prepared
    B, T, _ = features.shape
    feat = features.astype(jnp.bfloat16)
    h1 = jnp.maximum(
        jnp.einsum('btk,kd->btd', feat, w1p, preferred_element_type=jnp.float32)
        + b1p, 0.0)
    h2 = jnp.maximum(
        jnp.einsum('btk,kd->btd', h1.astype(jnp.bfloat16), w2p,
                   preferred_element_type=jnp.float32) + b2p, 0.0)
    mask = (jnp.arange(T)[None, :, None] < lengths[:, None, None]).astype(jnp.float32)
    pooled = (h2 * mask).sum(axis=1) * _safe_inv(lengths)[:, None]
    out = jnp.einsum('bd,de->be', pooled.astype(jnp.bfloat16), wop,
                     preferred_element_type=jnp.float32) + bop
    return out[:, :NUM_CLASSES]


def _reference_module_f32(features, lengths, raw_params):
    """Pure f32 reference following the PyTorch module order (normalize -> conv -> pool)."""
    mean, istd, w1t, b1, w2t, b2, wot, bo = raw_params
    B, T, _ = features.shape
    feat = (features - mean[None]) * istd[None]
    h1 = jnp.maximum(jnp.einsum('btk,kd->btd', feat, w1t) + b1[None], 0.0)
    h2 = jnp.maximum(jnp.einsum('btk,kd->btd', h1, w2t) + b2[None], 0.0)
    mask = (jnp.arange(T)[None, :, None] < lengths[:, None, None]).astype(jnp.float32)
    pooled = (h2 * mask).sum(axis=1) * _safe_inv(lengths)[:, None]
    return pooled @ wot + bo


def make_params(key, dim1, dim2):
    """Deterministic raw f32 params (shapes mirror the PyTorch module).

    Conv2d(1, dim1, (1,25)).weight  (dim1,1,1,25) -> stored transposed (25, dim1)
    Conv2d(1, dim2, (1,dim1)).weight (dim2,1,1,dim1) -> stored (dim1, dim2)
    Linear(dim2, 7).weight (7, dim2) -> stored (dim2, 7)
    """
    ks = jax.random.split(key, 8)
    mean = jax.random.normal(ks[0], (1, NUM_FEATS), jnp.float32) * 0.5
    std = 1.0 + jax.random.uniform(ks[1], (1, NUM_FEATS), jnp.float32)
    istd = 1.0 / std
    w1t = jax.random.normal(ks[2], (NUM_FEATS, dim1), jnp.float32) * 0.2
    b1 = jax.random.normal(ks[3], (1, dim1), jnp.float32) * 0.1
    w2t = jax.random.normal(ks[4], (dim1, dim2), jnp.float32) * 0.2
    b2 = jax.random.normal(ks[5], (1, dim2), jnp.float32) * 0.1
    wot = jax.random.normal(ks[6], (dim2, NUM_CLASSES), jnp.float32) * 0.2
    bo = jax.random.normal(ks[7], (1, NUM_CLASSES), jnp.float32) * 0.1
    return (mean, istd, w1t, b1, w2t, b2, wot, bo)


if __name__ == "__main__":
    key = jax.random.PRNGKey(0)
    B, T = 16, 16            # batch, max_seq_len  (tb=8 -> 2 parallel grid steps)
    dim1, dim2 = 32, 16

    k_feat, k_len, k_par = jax.random.split(key, 3)
    features = jax.random.normal(k_feat, (B, T, NUM_FEATS), jnp.float32)
    lengths = jax.random.randint(k_len, (B,), 1, T + 1).astype(jnp.int32)
    lengths = lengths.at[0].set(0)   # zero-length utterance exercises the 1/len guard
    lengths = lengths.at[1].set(T)   # full-length utterance
    # zero out padded frames, as the PyTorch module does
    valid = (jnp.arange(T)[None, :, None] < lengths[:, None, None]).astype(jnp.float32)
    features = features * valid

    params = make_params(k_par, dim1, dim2)

    out = llds_forward(features, lengths, params, tb=8)
    out = jax.block_until_ready(out)

    # Strict check against a reference with identical numerics (bf16 matmuls, folded norm).
    prepared = prepare_params(params)
    ref_bf16 = _reference_kernel_numerics(features, lengths, prepared)
    np.testing.assert_allclose(np.asarray(out), np.asarray(ref_bf16), rtol=1e-3, atol=1e-3)

    # Loose sanity check against the f32 module-order reference (bf16 rounding tolerance).
    ref_f32 = _reference_module_f32(features, lengths, params)
    np.testing.assert_allclose(np.asarray(out), np.asarray(ref_f32), rtol=1e-1, atol=1e-1)

    print("KERNEL_OK")
</pallas_src>

<mosaic_0001>
module attributes {stable_mosaic.version = 11 : i64} {
  func.func @_llds_kernel(%arg0: i32, %arg1: memref<8x16x25xf32, #tpu.memory_space<vmem>>, %arg2: memref<8x1xi32, #tpu.memory_space<vmem>>, %arg3: memref<25x32xbf16, #tpu.memory_space<vmem>>, %arg4: memref<1x32xf32, #tpu.memory_space<vmem>>, %arg5: memref<32x16xbf16, #tpu.memory_space<vmem>>, %arg6: memref<1x16xf32, #tpu.memory_space<vmem>>, %arg7: memref<16x128xbf16, #tpu.memory_space<vmem>>, %arg8: memref<1x128xf32, #tpu.memory_space<vmem>>, %arg9: memref<8x128xf32, #tpu.memory_space<vmem>>) attributes {dimension_semantics = [#tpu.dimension_semantics<parallel>], iteration_bounds = array<i64: 2>, scalar_prefetch = 0 : i64, scratch_operands = 0 : i64, tpu.core_type = #tpu.core_type<tc>, window_params = [{transform_indices = @transform_0, window_bounds = array<i64: 8, 16, 25>}, {transform_indices = @transform_1, window_bounds = array<i64: 8, 1>}, {pipeline_mode = #tpu.pipeline_mode<synchronous>, transform_indices = @transform_2, window_bounds = array<i64: 25, 32>}, {pipeline_mode = #tpu.pipeline_mode<synchronous>, transform_indices = @transform_3, window_bounds = array<i64: 1, 32>}, {pipeline_mode = #tpu.pipeline_mode<synchronous>, transform_indices = @transform_4, window_bounds = array<i64: 32, 16>}, {pipeline_mode = #tpu.pipeline_mode<synchronous>, transform_indices = @transform_5, window_bounds = array<i64: 1, 16>}, {pipeline_mode = #tpu.pipeline_mode<synchronous>, transform_indices = @transform_6, window_bounds = array<i64: 16, 128>}, {pipeline_mode = #tpu.pipeline_mode<synchronous>, transform_indices = @transform_7, window_bounds = array<i64: 1, 128>}, {transform_indices = @transform_8, window_bounds = array<i64: 8, 128>}]} {
    %c0 = arith.constant 0 : index
    %c0_0 = arith.constant 0 : index
    %c0_1 = arith.constant 0 : index
    %0 = vector.load %arg1[%c0, %c0_0, %c0_1] : memref<8x16x25xf32, #tpu.memory_space<vmem>>, vector<8x16x25xf32>
    %1 = vector.shape_cast %0 : vector<8x16x25xf32> to vector<128x25xf32>
    %2 = arith.truncf %1 : vector<128x25xf32> to vector<128x25xbf16>
    %c0_2 = arith.constant 0 : index
    %c0_3 = arith.constant 0 : index
    %3 = vector.load %arg3[%c0_2, %c0_3] : memref<25x32xbf16, #tpu.memory_space<vmem>>, vector<25x32xbf16>
    %cst = arith.constant dense<0.000000e+00> : vector<128x32xf32>
    %4 = tpu.matmul %2, %3, %cst {dimension_numbers = #tpu.dot_dimension_numbers<[1], [0], [0], [1], [0, 0, 1, 1], [], []>} : vector<128x25xbf16>, vector<25x32xbf16>, vector<128x32xf32> -> vector<128x32xf32>
    %c0_4 = arith.constant 0 : index
    %c0_5 = arith.constant 0 : index
    %5 = vector.load %arg4[%c0_4, %c0_5] : memref<1x32xf32, #tpu.memory_space<vmem>>, vector<1x32xf32>
    %6 = vector.broadcast %5 : vector<1x32xf32> to vector<128x32xf32>
    %7 = arith.addf %4, %6 : vector<128x32xf32>
    %cst_6 = arith.constant 0.000000e+00 : f32
    %8 = vector.broadcast %cst_6 : f32 to vector<128x32xf32>
    %9 = arith.maximumf %7, %8 : vector<128x32xf32>
    %10 = arith.truncf %9 : vector<128x32xf32> to vector<128x32xbf16>
    %c0_7 = arith.constant 0 : index
    %c0_8 = arith.constant 0 : index
    %11 = vector.load %arg5[%c0_7, %c0_8] : memref<32x16xbf16, #tpu.memory_space<vmem>>, vector<32x16xbf16>
    %cst_9 = arith.constant dense<0.000000e+00> : vector<128x16xf32>
    %12 = tpu.matmul %10, %11, %cst_9 {dimension_numbers = #tpu.dot_dimension_numbers<[1], [0], [0], [1], [0, 0, 1, 1], [], []>} : vector<128x32xbf16>, vector<32x16xbf16>, vector<128x16xf32> -> vector<128x16xf32>
    %c0_10 = arith.constant 0 : index
    %c0_11 = arith.constant 0 : index
    %13 = vector.load %arg6[%c0_10, %c0_11] : memref<1x16xf32, #tpu.memory_space<vmem>>, vector<1x16xf32>
    %14 = vector.broadcast %13 : vector<1x16xf32> to vector<128x16xf32>
    %15 = arith.addf %12, %14 : vector<128x16xf32>
    %cst_12 = arith.constant 0.000000e+00 : f32
    %16 = vector.broadcast %cst_12 : f32 to vector<128x16xf32>
    %17 = arith.maximumf %15, %16 : vector<128x16xf32>
    %18 = vector.shape_cast %17 : vector<128x16xf32> to vector<8x16x16xf32>
    %19 = tpu.iota {dimensions = array<i32: 1>} : vector<8x16x16xi32>
    %c0_13 = arith.constant 0 : index
    %c0_14 = arith.constant 0 : index
    %20 = vector.load %arg2[%c0_13, %c0_14] : memref<8x1xi32, #tpu.memory_space<vmem>>, vector<8x1xi32>
    %21 = vector.shape_cast %20 : vector<8x1xi32> to vector<8x1x1xi32>
    %22 = vector.broadcast %21 : vector<8x1x1xi32> to vector<8x16x16xi32>
    %23 = arith.cmpi slt, %19, %22 : vector<8x16x16xi32>
    %24 = arith.extui %23 : vector<8x16x16xi1> to vector<8x16x16xi32>
    %25 = arith.sitofp %24 : vector<8x16x16xi32> to vector<8x16x16xf32>
    %26 = arith.mulf %18, %25 : vector<8x16x16xf32>
    %cst_15 = arith.constant dense<0.000000e+00> : vector<8x16xf32>
    %27 = vector.multi_reduction <add>, %26, %cst_15 [1] : vector<8x16x16xf32> to vector<8x16xf32>
    %28 = arith.sitofp %20 : vector<8x1xi32> to vector<8x1xf32>
    %cst_16 = arith.constant 0.000000e+00 : f32
    %29 = vector.broadcast %cst_16 : f32 to vector<8x1xf32>
    %30 = arith.cmpf ogt, %28, %29 : vector<8x1xf32>
    %cst_17 = arith.constant 1.000000e+00 : f32
    %31 = vector.broadcast %cst_17 : f32 to vector<8x1xf32>
    %32 = arith.maximumf %28, %31 : vector<8x1xf32>
    %33 = tpu.reciprocal %32 : vector<8x1xf32> -> vector<8x1xf32>
    %cst_18 = arith.constant 0.000000e+00 : f32
    %34 = vector.broadcast %cst_18 : f32 to vector<8x1xf32>
    %35 = arith.select %30, %33, %34 : vector<8x1xi1>, vector<8x1xf32>
    %36 = vector.broadcast %35 : vector<8x1xf32> to vector<8x16xf32>
    %37 = arith.mulf %27, %36 : vector<8x16xf32>
    %38 = arith.truncf %37 : vector<8x16xf32> to vector<8x16xbf16>
    %c0_19 = arith.constant 0 : index
    %c0_20 = arith.constant 0 : index
    %39 = vector.load %arg7[%c0_19, %c0_20] : memref<16x128xbf16, #tpu.memory_space<vmem>>, vector<16x128xbf16>
    %cst_21 = arith.constant dense<0.000000e+00> : vector<8x128xf32>
    %40 = tpu.matmul %38, %39, %cst_21 {dimension_numbers = #tpu.dot_dimension_numbers<[1], [0], [0], [1], [0, 0, 1, 1], [], []>} : vector<8x16xbf16>, vector<16x128xbf16>, vector<8x128xf32> -> vector<8x128xf32>
    %c0_22 = arith.constant 0 : index
    %c0_23 = arith.constant 0 : index
    %41 = vector.load %arg8[%c0_22, %c0_23] : memref<1x128xf32, #tpu.memory_space<vmem>>, vector<1x128xf32>
    %42 = vector.broadcast %41 : vector<1x128xf32> to vector<8x128xf32>
    %43 = arith.addf %40, %42 : vector<8x128xf32>
    %c0_24 = arith.constant 0 : index
    %c0_25 = arith.constant 0 : index
    %44 = vector.load %arg9[%c0_24, %c0_25] : memref<8x128xf32, #tpu.memory_space<vmem>>, vector<8x128xf32>
    tpu.vector_store %arg9[%c0_24, %c0_25], %43 {strides = array<i32>} : memref<8x128xf32, #tpu.memory_space<vmem>>, vector<8x128xf32>,
    return
  }
  func.func @transform_0(%arg0: i32) -> (i32, i32, i32) {
    %c0_i32 = arith.constant 0 : i32
    %c0_i32_0 = arith.constant 0 : i32
    %c0_i32_1 = arith.constant 0 : i32
    return %arg0, %c0_i32, %c0_i32_0 : i32, i32, i32
  }
  func.func @transform_1(%arg0: i32) -> (i32, i32) {
    %c0_i32 = arith.constant 0 : i32
    %c0_i32_0 = arith.constant 0 : i32
    return %arg0, %c0_i32 : i32, i32
  }
  func.func @transform_2(%arg0: i32) -> (i32, i32) {
    %c0_i32 = arith.constant 0 : i32
    %c0_i32_0 = arith.constant 0 : i32
    %c0_i32_1 = arith.constant 0 : i32
    return %c0_i32, %c0_i32_0 : i32, i32
  }
  func.func @transform_3(%arg0: i32) -> (i32, i32) {
    %c0_i32 = arith.constant 0 : i32
    %c0_i32_0 = arith.constant 0 : i32
    %c0_i32_1 = arith.constant 0 : i32
    return %c0_i32, %c0_i32_0 : i32, i32
  }
  func.func @transform_4(%arg0: i32) -> (i32, i32) {
    %c0_i32 = arith.constant 0 : i32
    %c0_i32_0 = arith.constant 0 : i32
    %c0_i32_1 = arith.constant 0 : i32
    return %c0_i32, %c0_i32_0 : i32, i32
  }
  func.func @transform_5(%arg0: i32) -> (i32, i32) {
    %c0_i32 = arith.constant 0 : i32
    %c0_i32_0 = arith.constant 0 : i32
    %c0_i32_1 = arith.constant 0 : i32
    return %c0_i32, %c0_i32_0 : i32, i32
  }
  func.func @transform_6(%arg0: i32) -> (i32, i32) {
    %c0_i32 = arith.constant 0 : i32
    %c0_i32_0 = arith.constant 0 : i32
    %c0_i32_1 = arith.constant 0 : i32
    return %c0_i32, %c0_i32_0 : i32, i32
  }
  func.func @transform_7(%arg0: i32) -> (i32, i32) {
    %c0_i32 = arith.constant 0 : i32
    %c0_i32_0 = arith.constant 0 : i32
    %c0_i32_1 = arith.constant 0 : i32
    return %c0_i32, %c0_i32_0 : i32, i32
  }
  func.func @transform_8(%arg0: i32) -> (i32, i32) {
    %c0_i32 = arith.constant 0 : i32
    %c0_i32_0 = arith.constant 0 : i32
    return %arg0, %c0_i32 : i32, i32
  }
}

</mosaic_0001>

<llo_original>
// kernel: tpu_custom_call.1
$region0: #{tpu_custom_call.1}
  #allocation0 [shape = 'u32[]', space=smem, size = 0x4, offset = 0x4, fixed_abs, tag = 'smem constant byte address 0x4 - core index']
  #allocation1 [shape = 'u32[144,128]{1,0:T(1,128)}', space=vmem, size = 0x12000, scoped, tag = 'internal scratch']
  %s0 = inlined_call_operand.hbm [shape: f32[16,16,25], index: 0, kind: input, shape index: {}]
  %s1 = inlined_call_operand.vmem [shape: s32[16,1], index: 1, kind: input, shape index: {}]
  %s2 = inlined_call_operand.vmem [shape: bf16[25,32], index: 2, kind: input, shape index: {}]
  %s3 = inlined_call_operand.vmem [shape: f32[1,32], index: 3, kind: input, shape index: {}]
  %s4 = inlined_call_operand.vmem [shape: bf16[32,16], index: 4, kind: input, shape index: {}]
  %s5 = inlined_call_operand.vmem [shape: f32[1,16], index: 5, kind: input, shape index: {}]
  %s6 = inlined_call_operand.vmem [shape: bf16[16,128], index: 6, kind: input, shape index: {}]
  %s7 = inlined_call_operand.vmem [shape: f32[1,128], index: 7, kind: input, shape index: {}]
  %s8 = inlined_call_operand.hbm [shape: f32[16,128], index: 8, kind: output, shape index: {}]
  %s9 = sld [smem:[#allocation0]]
  $region69: #{tpu_custom_call.1} parent=0
    _
  %s11 = ssub.s32 1, %s9
  %s12 = scalar_select 0, %s11, %s9
  $region1: #{tpu_custom_call.1} parent=0
    #allocation2 [shape = 'u8[131072]{0}', space=vmem, size = 0x20000, scoped, tag = 'input window, operand 0']
    #allocation3 [shape = 's32[2]{0}', space=sflag, size = 0x8, scoped, tag = 'scoped memory for tpu_custom_call.1']
    #allocation4 [shape = 's32[2]{0}', space=sflag, size = 0x8, scoped, tag = 'scoped memory for tpu_custom_call.1']
    #allocation5 [shape = 'u8[8192]{0}', space=vmem, size = 0x2000, scoped, tag = 'output window, operand 0']
    %13 = vsyncpa [#allocation3], 0
    %s14 = scalar_lea.sflag [#allocation3], 1
    %15 = vsyncpa %s14, 0
    %16 = vsyncpa [#allocation4], 0
    %s17 = scalar_lea.sflag [#allocation4], 1
    %18 = vsyncpa %s17, 0
    loop: start=0, step=1, limit=4
    $region2: #{tpu_custom_call.1} parent=1 // loop_pre_header
      _
    $region3: #{tpu_custom_call.1} parent=1 // loop_header
      %s20 = sphi 0, %s24
      %p21 = scmp.ge.s32.totalorder %s20, 4
      %s30 = sphi 0, %s32
      %s33 = sphi 0, %s30
      %s34 = sphi 0, %s33
      %s50 = sphi 0, %s34
      %s56 = sphi 0, %s58
      %s59 = sphi 0, %s56
      %s60 = sphi 0, %s59
      %s76 = sphi 0, %s60
      %s80 = sphi 0, %s80
      %s82 = sphi 0, %s80
      %s83 = sphi 0, %s82
      %s97 = sphi 0, %s83
      %s101 = sphi 0, %s101
      %s103 = sphi 0, %s101
      %s104 = sphi 0, %s103
      %s118 = sphi 0, %s104
      %s122 = sphi 0, %s122
      %s124 = sphi 0, %s122
      %s125 = sphi 0, %s124
      %s139 = sphi 0, %s125
      %s143 = sphi 0, %s143
      %s145 = sphi 0, %s143
      %s146 = sphi 0, %s145
      %s160 = sphi 0, %s146
      %s164 = sphi 0, %s164
      %s166 = sphi 0, %s164
      %s167 = sphi 0, %s166
      %s181 = sphi 0, %s167
      %s185 = sphi 0, %s185
      %s187 = sphi 0, %s185
      %s188 = sphi 0, %s187
      %s202 = sphi 0, %s188
      %s208 = sphi 0, %s210
      %s211 = sphi 0, %s208
      %s212 = sphi 0, %s211
      %s228 = sphi 0, %s212
    $region4: #{tpu_custom_call.1} parent=1 // loop_header_branch
      %23 = sbr.rel (%p21) target = $region8
    $region5: #{tpu_custom_call.1} parent=1 // loop_body
      %s25 = ssub.s32 %s20, 1
      %s26 = ssub.s32 %s20, 2
      %s27 = sadd.s32 %s20, 1
      %s28 = ssub.s32 %s20, %s27
      %p29 = scmp.eq.s32.totalorder %s28, 0
      %s31 = sadd.s32 %s30, 1
      %s32 = scalar_select %p29, %s30, %s31
      %p35 = pneg %p29
      %p36 = scmp.eq.s32.totalorder %s20, 1
      %p37 = por %p35, %p36
      %p38 = scmp.ne.s32.totalorder %s30, %s33
      %p39 = scmp.eq.s32.totalorder %s20, 0
      %p40 = por %p38, %p39
      %p41 = scmp.ne.s32.totalorder %s30, %s33
      %p42 = scmp.eq.s32.totalorder %s25, 1
      %p43 = por %p41, %p42
      %p44 = scmp.ne.s32.totalorder %s33, %s34
      %p45 = scmp.eq.s32.totalorder %s25, 0
      %p46 = por %p44, %p45
      %p47 = scmp.ne.s32.totalorder %s33, %s34
      %p48 = scmp.eq.s32.totalorder %s26, 1
      %p49 = por %p47, %p48
      %p51 = scmp.ne.s32.totalorder %s34, %s50
      %p52 = scmp.eq.s32.totalorder %s26, 0
      %p53 = por %p51, %p52
      %s54 = ssub.s32 %s20, %s27
      %p55 = scmp.eq.s32.totalorder %s54, 0
      %s57 = sadd.s32 %s56, 1
      %s58 = scalar_select %p55, %s56, %s57
      %p61 = pneg %p55
      %p62 = scmp.eq.s32.totalorder %s20, 1
      %p63 = por %p61, %p62
      %p64 = scmp.ne.s32.totalorder %s56, %s59
      %p65 = scmp.eq.s32.totalorder %s20, 0
      %p66 = por %p64, %p65
      %p67 = scmp.ne.s32.totalorder %s56, %s59
      %p68 = scmp.eq.s32.totalorder %s25, 1
      %p69 = por %p67, %p68
      %p70 = scmp.ne.s32.totalorder %s59, %s60
      %p71 = scmp.eq.s32.totalorder %s25, 0
      %p72 = por %p70, %p71
      %p73 = scmp.ne.s32.totalorder %s59, %s60
      %p74 = scmp.eq.s32.totalorder %s26, 1
      %p75 = por %p73, %p74
      %p77 = scmp.ne.s32.totalorder %s60, %s76
      %p78 = scmp.eq.s32.totalorder %s26, 0
      %p79 = por %p77, %p78
      %s81 = sadd.s32 %s80, 1
      %p84 = scmp.eq.s32.totalorder %s20, 1
      %p85 = scmp.ne.s32.totalorder %s80, %s82
      %p86 = scmp.eq.s32.totalorder %s20, 0
      %p87 = por %p85, %p86
      %p88 = scmp.ne.s32.totalorder %s80, %s82
      %p89 = scmp.eq.s32.totalorder %s25, 1
      %p90 = por %p88, %p89
      %p91 = scmp.ne.s32.totalorder %s82, %s83
      %p92 = scmp.eq.s32.totalorder %s25, 0
      %p93 = por %p91, %p92
      %p94 = scmp.ne.s32.totalorder %s82, %s83
      %p95 = scmp.eq.s32.totalorder %s26, 1
      %p96 = por %p94, %p95
      %p98 = scmp.ne.s32.totalorder %s83, %s97
      %p99 = scmp.eq.s32.totalorder %s26, 0
      %p100 = por %p98, %p99
      %s102 = sadd.s32 %s101, 1
      %p105 = scmp.eq.s32.totalorder %s20, 1
      %p106 = scmp.ne.s32.totalorder %s101, %s103
      %p107 = scmp.eq.s32.totalorder %s20, 0
      %p108 = por %p106, %p107
      %p109 = scmp.ne.s32.totalorder %s101, %s103
      %p110 = scmp.eq.s32.totalorder %s25, 1
      %p111 = por %p109, %p110
      %p112 = scmp.ne.s32.totalorder %s103, %s104
      %p113 = scmp.eq.s32.totalorder %s25, 0
      %p114 = por %p112, %p113
      %p115 = scmp.ne.s32.totalorder %s103, %s104
      %p116 = scmp.eq.s32.totalorder %s26, 1
      %p117 = por %p115, %p116
      %p119 = scmp.ne.s32.totalorder %s104, %s118
      %p120 = scmp.eq.s32.totalorder %s26, 0
      %p121 = por %p119, %p120
      %s123 = sadd.s32 %s122, 1
      %p126 = scmp.eq.s32.totalorder %s20, 1
      %p127 = scmp.ne.s32.totalorder %s122, %s124
      %p128 = scmp.eq.s32.totalorder %s20, 0
      %p129 = por %p127, %p128
      %p130 = scmp.ne.s32.totalorder %s122, %s124
      %p131 = scmp.eq.s32.totalorder %s25, 1
      %p132 = por %p130, %p131
      %p133 = scmp.ne.s32.totalorder %s124, %s125
      %p134 = scmp.eq.s32.totalorder %s25, 0
      %p135 = por %p133, %p134
      %p136 = scmp.ne.s32.totalorder %s124, %s125
      %p137 = scmp.eq.s32.totalorder %s26, 1
      %p138 = por %p136, %p137
      %p140 = scmp.ne.s32.totalorder %s125, %s139
      %p141 = scmp.eq.s32.totalorder %s26, 0
      %p142 = por %p140, %p141
      %s144 = sadd.s32 %s143, 1
      %p147 = scmp.eq.s32.totalorder %s20, 1
      %p148 = scmp.ne.s32.totalorder %s143, %s145
      %p149 = scmp.eq.s32.totalorder %s20, 0
      %p150 = por %p148, %p149
      %p151 = scmp.ne.s32.totalorder %s143, %s145
      %p152 = scmp.eq.s32.totalorder %s25, 1
      %p153 = por %p151, %p152
      %p154 = scmp.ne.s32.totalorder %s145, %s146
      %p155 = scmp.eq.s32.totalorder %s25, 0
      %p156 = por %p154, %p155
      %p157 = scmp.ne.s32.totalorder %s145, %s146
      %p158 = scmp.eq.s32.totalorder %s26, 1
      %p159 = por %p157, %p158
      %p161 = scmp.ne.s32.totalorder %s146, %s160
      %p162 = scmp.eq.s32.totalorder %s26, 0
      %p163 = por %p161, %p162
      %s165 = sadd.s32 %s164, 1
      %p168 = scmp.eq.s32.totalorder %s20, 1
      %p169 = scmp.ne.s32.totalorder %s164, %s166
      %p170 = scmp.eq.s32.totalorder %s20, 0
      %p171 = por %p169, %p170
      %p172 = scmp.ne.s32.totalorder %s164, %s166
      %p173 = scmp.eq.s32.totalorder %s25, 1
      %p174 = por %p172, %p173
      %p175 = scmp.ne.s32.totalorder %s166, %s167
      %p176 = scmp.eq.s32.totalorder %s25, 0
      %p177 = por %p175, %p176
      %p178 = scmp.ne.s32.totalorder %s166, %s167
      %p179 = scmp.eq.s32.totalorder %s26, 1
      %p180 = por %p178, %p179
      %p182 = scmp.ne.s32.totalorder %s167, %s181
      %p183 = scmp.eq.s32.totalorder %s26, 0
      %p184 = por %p182, %p183
      %s186 = sadd.s32 %s185, 1
      %p189 = scmp.eq.s32.totalorder %s20, 1
      %p190 = scmp.ne.s32.totalorder %s185, %s187
      %p191 = scmp.eq.s32.totalorder %s20, 0
      %p192 = por %p190, %p191
      %p193 = scmp.ne.s32.totalorder %s185, %s187
      %p194 = scmp.eq.s32.totalorder %s25, 1
      %p195 = por %p193, %p194
      %p196 = scmp.ne.s32.totalorder %s187, %s188
      %p197 = scmp.eq.s32.totalorder %s25, 0
      %p198 = por %p196, %p197
      %p199 = scmp.ne.s32.totalorder %s187, %s188
      %p200 = scmp.eq.s32.totalorder %s26, 1
      %p201 = por %p199, %p200
      %p203 = scmp.ne.s32.totalorder %s188, %s202
      %p204 = scmp.eq.s32.totalorder %s26, 0
      %p205 = por %p203, %p204
      %s206 = ssub.s32 %s20, %s27
      %p207 = scmp.eq.s32.totalorder %s206, 0
      %s209 = sadd.s32 %s208, 1
      %s210 = scalar_select %p207, %s208, %s209
      %p213 = pneg %p207
      %p214 = scmp.eq.s32.totalorder %s20, 1
      %p215 = por %p213, %p214
      %p216 = scmp.ne.s32.totalorder %s208, %s211
      %p217 = scmp.eq.s32.totalorder %s20, 0
      %p218 = por %p216, %p217
      %p219 = scmp.ne.s32.totalorder %s208, %s211
      %p220 = scmp.eq.s32.totalorder %s25, 1
      %p221 = por %p219, %p220
      %p222 = scmp.ne.s32.totalorder %s211, %s212
      %p223 = scmp.eq.s32.totalorder %s25, 0
      %p224 = por %p222, %p223
      %p225 = scmp.ne.s32.totalorder %s211, %s212
      %p226 = scmp.eq.s32.totalorder %s26, 1
      %p227 = por %p225, %p226
      %p229 = scmp.ne.s32.totalorder %s212, %s228
      %p230 = scmp.eq.s32.totalorder %s26, 0
      %p231 = por %p229, %p230
      %p232 = scmp.le.s32.totalorder 1, %s20
      %p233 = scmp.lt.s32.totalorder %s20, 3
      %p234 = pnand %p232, %p233
      %p235 = pneg %p234
      // Predicated region
      $region9: #{tpu_custom_call.1} parent=5 // pred_check
        _
      $region10: #{tpu_custom_call.1} parent=5 // pred_check_branch
        %237 = sbr.rel (%p234) target = $region12
      $region11: #{tpu_custom_call.1} parent=5 // pred_region
        %s238 = ssub.s32 %s20, 1
        // Predicated region
        $region13: #{tpu_custom_call.1} parent=11 // pred_check
          %p239 = pneg %p93
        $region14: #{tpu_custom_call.1} parent=11 // pred_check_branch
          %241 = sbr.rel (%p239) target = $region16
        $region15: #{tpu_custom_call.1} parent=11 // pred_region
          _
        $region16: #{tpu_custom_call.1} parent=11 // pred_fallthru
          _
        // Predicated region
        $region17: #{tpu_custom_call.1} parent=11 // pred_check
          %p242 = pneg %p114
        $region18: #{tpu_custom_call.1} parent=11 // pred_check_branch
          %244 = sbr.rel (%p242) target = $region20
        $region19: #{tpu_custom_call.1} parent=11 // pred_region
          _
        $region20: #{tpu_custom_call.1} parent=11 // pred_fallthru
          _
        // Predicated region
        $region21: #{tpu_custom_call.1} parent=11 // pred_check
          %p245 = pneg %p135
        $region22: #{tpu_custom_call.1} parent=11 // pred_check_branch
          %247 = sbr.rel (%p245) target = $region24
        $region23: #{tpu_custom_call.1} parent=11 // pred_region
          _
        $region24: #{tpu_custom_call.1} parent=11 // pred_fallthru
          _
        // Predicated region
        $region25: #{tpu_custom_call.1} parent=11 // pred_check
          %p248 = pneg %p156
        $region26: #{tpu_custom_call.1} parent=11 // pred_check_branch
          %250 = sbr.rel (%p248) target = $region28
        $region27: #{tpu_custom_call.1} parent=11 // pred_region
          _
        $region28: #{tpu_custom_call.1} parent=11 // pred_fallthru
          _
        // Predicated region
        $region29: #{tpu_custom_call.1} parent=11 // pred_check
          %p251 = pneg %p177
        $region30: #{tpu_custom_call.1} parent=11 // pred_check_branch
          %253 = sbr.rel (%p251) target = $region32
        $region31: #{tpu_custom_call.1} parent=11 // pred_region
          _
        $region32: #{tpu_custom_call.1} parent=11 // pred_fallthru
          _
        // Predicated region
        $region33: #{tpu_custom_call.1} parent=11 // pred_check
          %p254 = pneg %p198
        $region34: #{tpu_custom_call.1} parent=11 // pred_check_branch
          %256 = sbr.rel (%p254) target = $region36
        $region35: #{tpu_custom_call.1} parent=11 // pred_region
          _
        $region36: #{tpu_custom_call.1} parent=11 // pred_fallthru
          _
      $region12: #{tpu_custom_call.1} parent=5 // pred_fallthru
        _
      %p257 = scmp.lt.s32.totalorder %s20, 2
      // Predicated region
      $region37: #{tpu_custom_call.1} parent=5 // pred_check
        %p258 = pneg %p257
      $region38: #{tpu_custom_call.1} parent=5 // pred_check_branch
        %260 = sbr.rel (%p258) target = $region40
      $region39: #{tpu_custom_call.1} parent=5 // pred_region
        // Predicated region
        $region41: #{tpu_custom_call.1} parent=39 // pred_check
          %p261 = pneg %p40
        $region42: #{tpu_custom_call.1} parent=39 // pred_check_branch
          %263 = sbr.rel (%p261) target = $region44
        $region43: #{tpu_custom_call.1} parent=39 // pred_region
          %s264 = sand.u32 %s30, 1
          %s265 = scalar_lea.sflag [#allocation3], %s264
          %s266 = sand.u32 %s30, 1
          %s267 = smul.addr %s266, 128
          %s268 = scalar_lea.vmem [#allocation2], %s267
          %s269 = smul.u32 8, %s20
          %s271 = ssub.s32 2048, 2048
          %272 = vsyncadd %s265, %s271
          %s273 = smul.addr %s269, 2
          %s274 = smul.addr %s273, 128
          %s275 = scalar_lea.hbm %s0, %s274
          %s276 = sshll.u32 %s268, 4
          %s277 = int_to_ptr.vmem [resolvable:$true] %s276
          %282 = dma.hbm_to_vmem [thread:$0]  %s275, 2048, %s277, %s265, 128, 128, 8
        $region44: #{tpu_custom_call.1} parent=39 // pred_fallthru
          _
        // Predicated region
        $region45: #{tpu_custom_call.1} parent=39 // pred_check
          %p283 = pneg %p66
        $region46: #{tpu_custom_call.1} parent=39 // pred_check_branch
          %285 = sbr.rel (%p283) target = $region48
        $region47: #{tpu_custom_call.1} parent=39 // pred_region
          %p286 = scmp.lt.s32.totalorder %s20, 1
          %s287 = scalar_select %p286, %s20, 1
          %s288 = smul.addr %s287, 8
          %s289 = scalar_lea.vmem %s1, %s288
        $region48: #{tpu_custom_call.1} parent=39 // pred_fallthru
          _
      $region40: #{tpu_custom_call.1} parent=5 // pred_fallthru
        _
      %p290 = scmp.le.s32.totalorder 1, %s20
      %p291 = scmp.lt.s32.totalorder %s20, 3
      %p292 = pnand %p290, %p291
      %p293 = pneg %p292
      // Predicated region
      $region49: #{tpu_custom_call.1} parent=5 // pred_check
        _
      $region50: #{tpu_custom_call.1} parent=5 // pred_check_branch
        %295 = sbr.rel (%p292) target = $region52
      $region51: #{tpu_custom_call.1} parent=5 // pred_region
        %s296 = ssub.s32 %s20, 1
        %s297 = sand.u32 %s33, 1
        %s298 = scalar_lea.sflag [#allocation3], %s297
        %s299 = sand.u32 %s33, 1
        %s300 = smul.addr %s299, 128
        %s301 = scalar_lea.vmem [#allocation2], %s300
        // Predicated region
        $region53: #{tpu_custom_call.1} parent=51 // pred_check
          %p302 = pneg %p46
        $region54: #{tpu_custom_call.1} parent=51 // pred_check_branch
          %304 = sbr.rel (%p302) target = $region56
        $region55: #{tpu_custom_call.1} parent=51 // pred_region
          %305 = dma.done %s298, 2048
        $region56: #{tpu_custom_call.1} parent=51 // pred_fallthru
          _
        %s306 = sand.u32 %s33, 1
        %s307 = scalar_lea.sflag [#allocation3], %s306
        %s308 = sand.u32 %s33, 1
        %s309 = smul.addr %s308, 128
        %s310 = scalar_lea.vmem [#allocation2], %s309
        %p311 = pneg %p46
        %p312 = pneg %p43
        %p313 = scmp.lt.s32.totalorder %s25, 1
        %s314 = scalar_select %p313, %s25, 1
        %s315 = smul.addr %s314, 8
        %s316 = scalar_lea.vmem %s1, %s315
        %p317 = pneg %p72
        %p318 = pneg %p69
        %p319 = pneg %p93
        %p320 = pneg %p90
        %p321 = pneg %p114
        %p322 = pneg %p111
        %p323 = pneg %p135
        %p324 = pneg %p132
        %p325 = pneg %p156
        %p326 = pneg %p153
        %p327 = pneg %p177
        %p328 = pneg %p174
        %p329 = pneg %p198
        %p330 = pneg %p195
        %p331 = pneg %p224
        %p332 = pneg %p221
        %s333 = sand.u32 %s211, 1
        %s334 = scalar_lea.sflag [#allocation4], %s333
        %s335 = sand.u32 %s211, 1
        %s336 = smul.addr %s335, 8
        %s337 = scalar_lea.vmem [#allocation5], %s336
        %s338 = smul.u32 8, %s25
        %p339 = scmp.lt.s32.totalorder %s25, 1
        %s340 = scalar_select %p339, %s25, 1
        %s341 = smul.addr %s340, 8
        %s342 = scalar_lea.vmem %s1, %s341
        %v344 = vld [vmem:[%s301] sm:$0xff]
        %v345 = vld [vmem:[%s301 + $0x8] sm:$0xff]
        %v346 = vld [vmem:[%s301 + $0x10] sm:$0xff]
        %v347 = vld [vmem:[%s301 + $0x18] sm:$0xff]
        %v348 = vld [vmem:[%s301 + $0x20] sm:$0xff]
        %v349 = vld [vmem:[%s301 + $0x28] sm:$0xff]
        %v350 = vld [vmem:[%s301 + $0x30] sm:$0xff]
        %v351 = vld [vmem:[%s301 + $0x38] sm:$0xff]
        %v352 = vld [vmem:[%s301 + $0x40] sm:$0xff]
        %v353 = vld [vmem:[%s301 + $0x48] sm:$0xff]
        %v354 = vld [vmem:[%s301 + $0x50] sm:$0xff]
        %v355 = vld [vmem:[%s301 + $0x58] sm:$0xff]
        %v356 = vld [vmem:[%s301 + $0x60] sm:$0xff]
        %v357 = vld [vmem:[%s301 + $0x68] sm:$0xff]
        %v358 = vld [vmem:[%s301 + $0x70] sm:$0xff]
        %v359 = vld [vmem:[%s301 + $0x78] sm:$0xff]
        %v360 = vpack.c.bf16 %v345, %v344
        %v361 = vpack.c.bf16 %v347, %v346
        %v362 = vpack.c.bf16 %v349, %v348
        %v363 = vpack.c.bf16 %v351, %v350
        %v364 = vpack.c.bf16 %v353, %v352
        %v365 = vpack.c.bf16 %v355, %v354
        %v366 = vpack.c.bf16 %v357, %v356
        %v367 = vpack.c.bf16 %v359, %v358
        %v368 = vld [vmem:[%s2] sm:$0xf]
        %v369 = vld [vmem:[%s2 + $0x4] sm:$0xf]
        %v370 = vld [vmem:[%s2 + $0x8] sm:$0xf]
        %v371 = vld [vmem:[%s2 + $0xc] sm:$0x1]
        %v372 = vld [vmem:[%s3] sm:$0x1]
        %v374 = vlaneseq
        %v375 = vshrl.u32 %v374, 7
        %v376 = vsub.s32 0, %v375
        %v377 = vrot.slane %v372, %v376
        %v383 = vunpack.c.l.b16 %v368
        %v384 = vunpack.c.l.b16 %v369
        %v385 = vunpack.c.l.b16 %v370
        %v386 = vunpack.c.l.b16 %v371
        %v387 = vpack.c.b16 %v384, %v383
        %v388 = vpack.c.b16 %v386, %v385
        %vm390 = vcmask 203776
        %v392 = vsel %vm390, %v360, 0
        %v395 = vsel %vm390, %v361, 0
        %v398 = vsel %vm390, %v362, 0
        %v401 = vsel %vm390, %v363, 0
        %v404 = vsel %vm390, %v364, 0
        %v407 = vsel %vm390, %v365, 0
        %v410 = vsel %vm390, %v366, 0
        %v413 = vsel %vm390, %v367, 0
        %vm415 = vcmask 1043456
        %vm416 = vcmask 1044480
        %v417 = vsel %vm415, 4294967295, 65535
        %v418 = vsel %vm416, %v417, 0
        %v420 = vand.u32 %v388, %v418
        %422 = vmatprep.subr.bf16.mxu0 0
        %423 = vmatpush1.bf16.msra.mxu0 %v387
        %424 = vmatprep.subr.bf16.mxu0 0
        %425 = vmatpush1.bf16.msra.mxu0 %v420
        %426 = vmatprep.subr.bf16.mxu0 0
        %427 = vmatpush1.bf16.msra.mxu0 0
        %428 = vmatprep.subr.bf16.mxu0 0
        %429 = vmatpush1.bf16.msra.mxu0 0
        %430 = vmatprep.subr.bf16.mxu0 0
        %431 = vmatpush1.bf16.msra.mxu0 0
        %432 = vmatprep.subr.bf16.mxu0 0
        %433 = vmatpush1.bf16.msra.mxu0 0
        %434 = vmatprep.subr.bf16.mxu0 0
        %435 = vmatpush1.bf16.msra.mxu0 0
        %436 = vmatprep.subr.bf16.mxu0 0
        %437 = vmatpush1.bf16.msra.mxu0 0
        %438 = vmatprep.subr.bf16.mxu0 0
        %439 = vmatpush1.bf16.msra.mxu0 0
        %440 = vmatprep.subr.bf16.mxu0 0
        %441 = vmatpush1.bf16.msra.mxu0 0
        %442 = vmatprep.subr.bf16.mxu0 0
        %443 = vmatpush1.bf16.msra.mxu0 0
        %444 = vmatprep.subr.bf16.mxu0 0
        %445 = vmatpush1.bf16.msra.mxu0 0
        %446 = vmatprep.subr.bf16.mxu0 0
        %447 = vmatpush1.bf16.msra.mxu0 0
        %448 = vmatprep.subr.bf16.mxu0 0
        %449 = vmatpush1.bf16.msra.mxu0 0
        %450 = vmatprep.subr.bf16.mxu0 0
        %451 = vmatpush1.bf16.msra.mxu0 0
        %452 = vmatprep.subr.bf16.mxu0 0
        %453 = vmatpush1.bf16.msra.mxu0 0
        %454 = vmatprep.mubr.bf16.mxu0 0
        %455 = vmatmul.mubr.bf16.gmra.mrb[0].mxu0 %v392
        %v456 = vpop.f32.mrb[0].mxu0
        %v457 = vadd.f32 %v377, %v456
        %v458 = vpop.f32.mrb[0].mxu0
        %v459 = vpop.f32.mrb[0].mxu0
        %v460 = vadd.f32 %v377, %v459
        %v461 = vpop.f32.mrb[0].mxu0
        %462 = vmatprep.mubr.bf16.mxu0 0
        %463 = vmatmul.mubr.bf16.gmra.mrb[0].mxu0 %v395
        %v464 = vpop.f32.mrb[0].mxu0
        %v465 = vadd.f32 %v377, %v464
        %v466 = vpop.f32.mrb[0].mxu0
        %v467 = vpop.f32.mrb[0].mxu0
        %v468 = vadd.f32 %v377, %v467
        %v469 = vpop.f32.mrb[0].mxu0
        %470 = vmatprep.mubr.bf16.mxu0 0
        %471 = vmatmul.mubr.bf16.gmra.mrb[0].mxu0 %v398
        %v472 = vpop.f32.mrb[0].mxu0
        %v473 = vadd.f32 %v377, %v472
        %v474 = vpop.f32.mrb[0].mxu0
        %v475 = vpop.f32.mrb[0].mxu0
        %v476 = vadd.f32 %v377, %v475
        %v477 = vpop.f32.mrb[0].mxu0
        %478 = vmatprep.mubr.bf16.mxu0 0
        %479 = vmatmul.mubr.bf16.gmra.mrb[0].mxu0 %v401
        %v480 = vpop.f32.mrb[0].mxu0
        %v481 = vadd.f32 %v377, %v480
        %v482 = vpop.f32.mrb[0].mxu0
        %v483 = vpop.f32.mrb[0].mxu0
        %v484 = vadd.f32 %v377, %v483
        %v485 = vpop.f32.mrb[0].mxu0
        %486 = vmatprep.mubr.bf16.mxu0 0
        %487 = vmatmul.mubr.bf16.gmra.mrb[0].mxu0 %v404
        %v488 = vpop.f32.mrb[0].mxu0
        %v489 = vadd.f32 %v377, %v488
        %v490 = vpop.f32.mrb[0].mxu0
        %v491 = vpop.f32.mrb[0].mxu0
        %v492 = vadd.f32 %v377, %v491
        %v493 = vpop.f32.mrb[0].mxu0
        %494 = vmatprep.mubr.bf16.mxu0 0
        %495 = vmatmul.mubr.bf16.gmra.mrb[0].mxu0 %v407
        %v496 = vpop.f32.mrb[0].mxu0
        %v497 = vadd.f32 %v377, %v496
        %v498 = vpop.f32.mrb[0].mxu0
        %v499 = vpop.f32.mrb[0].mxu0
        %v500 = vadd.f32 %v377, %v499
        %v501 = vpop.f32.mrb[0].mxu0
        %502 = vmatprep.mubr.bf16.mxu0 0
        %503 = vmatmul.mubr.bf16.gmra.mrb[0].mxu0 %v410
        %v504 = vpop.f32.mrb[0].mxu0
        %v505 = vadd.f32 %v377, %v504
        %v506 = vpop.f32.mrb[0].mxu0
        %v507 = vpop.f32.mrb[0].mxu0
        %v508 = vadd.f32 %v377, %v507
        %v509 = vpop.f32.mrb[0].mxu0
        %510 = vmatprep.mubr.bf16.mxu0 0
        %511 = vmatmul.mubr.bf16.gmra.mrb[0].mxu0 %v413
        %v512 = vpop.f32.mrb[0].mxu0
        %v513 = vadd.f32 %v377, %v512
        %v514 = vpop.f32.mrb[0].mxu0
        %v515 = vpop.f32.mrb[0].mxu0
        %v516 = vadd.f32 %v377, %v515
        %v517 = vpop.f32.mrb[0].mxu0
        %518 = vdwg.mxu0
        %v519 = vmax.f32 %v457, 0.0
        %v520 = vmax.f32 %v460, 0.0
        %v521 = vmax.f32 %v465, 0.0
        %v522 = vmax.f32 %v468, 0.0
        %v523 = vmax.f32 %v473, 0.0
        %v524 = vmax.f32 %v476, 0.0
        %v525 = vmax.f32 %v481, 0.0
        %v526 = vmax.f32 %v484, 0.0
        %v527 = vmax.f32 %v489, 0.0
        %v528 = vmax.f32 %v492, 0.0
        %v529 = vmax.f32 %v497, 0.0
        %v530 = vmax.f32 %v500, 0.0
        %v531 = vmax.f32 %v505, 0.0
        %v532 = vmax.f32 %v508, 0.0
        %v533 = vmax.f32 %v513, 0.0
        %v534 = vmax.f32 %v516, 0.0
        %v535 = vpack.c.bf16 %v520, %v519
        %v536 = vpack.c.bf16 %v522, %v521
        %v537 = vpack.c.bf16 %v524, %v523
        %v538 = vpack.c.bf16 %v526, %v525
        %v539 = vpack.c.bf16 %v528, %v527
        %v540 = vpack.c.bf16 %v530, %v529
        %v541 = vpack.c.bf16 %v532, %v531
        %v542 = vpack.c.bf16 %v534, %v533
        %v543 = vld [vmem:[%s4] sm:$0xf]
        %v544 = vld [vmem:[%s4 + $0x4] sm:$0xf]
        %v545 = vld [vmem:[%s4 + $0x8] sm:$0xf]
        %v546 = vld [vmem:[%s4 + $0xc] sm:$0xf]
        %v547 = vld [vmem:[%s5] sm:$0x1]
        %v549 = vlaneseq
        %v550 = vshrl.u32 %v549, 7
        %v551 = vsub.s32 0, %v550
        %v552 = vrot.slane %v547, %v551
        %v558 = vunpack.c.l.b16 %v543
        %v559 = vunpack.c.l.b16 %v544
        %v560 = vunpack.c.l.b16 %v545
        %v561 = vunpack.c.l.b16 %v546
        %v562 = vpack.c.b16 %v559, %v558
        %v563 = vpack.c.b16 %v561, %v560
        %vm566 = vcmask 261120
        %v568 = vsel %vm566, %v535, 0
        %v571 = vsel %vm566, %v536, 0
        %v574 = vsel %vm566, %v537, 0
        %v577 = vsel %vm566, %v538, 0
        %v580 = vsel %vm566, %v539, 0
        %v583 = vsel %vm566, %v540, 0
        %v586 = vsel %vm566, %v541, 0
        %v589 = vsel %vm566, %v542, 0
        %591 = vmatprep.subr.bf16.mxu0 0
        %592 = vmatpush1.bf16.msra.mxu0 %v562
        %593 = vmatprep.subr.bf16.mxu0 0
        %594 = vmatpush1.bf16.msra.mxu0 %v563
        %595 = vmatprep.subr.bf16.mxu0 0
        %596 = vmatpush1.bf16.msra.mxu0 0
        %597 = vmatprep.subr.bf16.mxu0 0
        %598 = vmatpush1.bf16.msra.mxu0 0
        %599 = vmatprep.subr.bf16.mxu0 0
        %600 = vmatpush1.bf16.msra.mxu0 0
        %601 = vmatprep.subr.bf16.mxu0 0
        %602 = vmatpush1.bf16.msra.mxu0 0
        %603 = vmatprep.subr.bf16.mxu0 0
        %604 = vmatpush1.bf16.msra.mxu0 0
        %605 = vmatprep.subr.bf16.mxu0 0
        %606 = vmatpush1.bf16.msra.mxu0 0
        %607 = vmatprep.subr.bf16.mxu0 0
        %608 = vmatpush1.bf16.msra.mxu0 0
        %609 = vmatprep.subr.bf16.mxu0 0
        %610 = vmatpush1.bf16.msra.mxu0 0
        %611 = vmatprep.subr.bf16.mxu0 0
        %612 = vmatpush1.bf16.msra.mxu0 0
        %613 = vmatprep.subr.bf16.mxu0 0
        %614 = vmatpush1.bf16.msra.mxu0 0
        %615 = vmatprep.subr.bf16.mxu0 0
        %616 = vmatpush1.bf16.msra.mxu0 0
        %617 = vmatprep.subr.bf16.mxu0 0
        %618 = vmatpush1.bf16.msra.mxu0 0
        %619 = vmatprep.subr.bf16.mxu0 0
        %620 = vmatpush1.bf16.msra.mxu0 0
        %621 = vmatprep.subr.bf16.mxu0 0
        %622 = vmatpush1.bf16.msra.mxu0 0
        %623 = vmatprep.mubr.bf16.mxu0 0
        %624 = vmatmul.mubr.bf16.gmra.mrb[0].mxu0 %v568
        %v625 = vpop.f32.mrb[0].mxu0
        %v626 = vadd.f32 %v552, %v625
        %v627 = vpop.f32.mrb[0].mxu0
        %v628 = vpop.f32.mrb[0].mxu0
        %v629 = vadd.f32 %v552, %v628
        %v630 = vpop.f32.mrb[0].mxu0
        %631 = vmatprep.mubr.bf16.mxu0 0
        %632 = vmatmul.mubr.bf16.gmra.mrb[0].mxu0 %v571
        %v633 = vpop.f32.mrb[0].mxu0
        %v634 = vadd.f32 %v552, %v633
        %v635 = vpop.f32.mrb[0].mxu0
        %v636 = vpop.f32.mrb[0].mxu0
        %v637 = vadd.f32 %v552, %v636
        %v638 = vpop.f32.mrb[0].mxu0
        %639 = vmatprep.mubr.bf16.mxu0 0
        %640 = vmatmul.mubr.bf16.gmra.mrb[0].mxu0 %v574
        %v641 = vpop.f32.mrb[0].mxu0
        %v642 = vadd.f32 %v552, %v641
        %v643 = vpop.f32.mrb[0].mxu0
        %v644 = vpop.f32.mrb[0].mxu0
        %v645 = vadd.f32 %v552, %v644
        %v646 = vpop.f32.mrb[0].mxu0
        %647 = vmatprep.mubr.bf16.mxu0 0
        %648 = vmatmul.mubr.bf16.gmra.mrb[0].mxu0 %v577
        %v649 = vpop.f32.mrb[0].mxu0
        %v650 = vadd.f32 %v552, %v649
        %v651 = vpop.f32.mrb[0].mxu0
        %v652 = vpop.f32.mrb[0].mxu0
        %v653 = vadd.f32 %v552, %v652
        %v654 = vpop.f32.mrb[0].mxu0
        %655 = vmatprep.mubr.bf16.mxu0 0
        %656 = vmatmul.mubr.bf16.gmra.mrb[0].mxu0 %v580
        %v657 = vpop.f32.mrb[0].mxu0
        %v658 = vadd.f32 %v552, %v657
        %v659 = vpop.f32.mrb[0].mxu0
        %v660 = vpop.f32.mrb[0].mxu0
        %v661 = vadd.f32 %v552, %v660
        %v662 = vpop.f32.mrb[0].mxu0
        %663 = vmatprep.mubr.bf16.mxu0 0
        %664 = vmatmul.mubr.bf16.gmra.mrb[0].mxu0 %v583
        %v665 = vpop.f32.mrb[0].mxu0
        %v666 = vadd.f32 %v552, %v665
        %v667 = vpop.f32.mrb[0].mxu0
        %v668 = vpop.f32.mrb[0].mxu0
        %v669 = vadd.f32 %v552, %v668
        %v670 = vpop.f32.mrb[0].mxu0
        %671 = vmatprep.mubr.bf16.mxu0 0
        %672 = vmatmul.mubr.bf16.gmra.mrb[0].mxu0 %v586
        %v673 = vpop.f32.mrb[0].mxu0
        %v674 = vadd.f32 %v552, %v673
        %v675 = vpop.f32.mrb[0].mxu0
        %v676 = vpop.f32.mrb[0].mxu0
        %v677 = vadd.f32 %v552, %v676
        %v678 = vpop.f32.mrb[0].mxu0
        %679 = vmatprep.mubr.bf16.mxu0 0
        %680 = vmatmul.mubr.bf16.gmra.mrb[0].mxu0 %v589
        %v681 = vpop.f32.mrb[0].mxu0
        %v682 = vadd.f32 %v552, %v681
        %v683 = vpop.f32.mrb[0].mxu0
        %v684 = vpop.f32.mrb[0].mxu0
        %v685 = vadd.f32 %v552, %v684
        %v686 = vpop.f32.mrb[0].mxu0
        %687 = vdwg.mxu0
        %v688 = vmax.f32 %v626, 0.0
        %v689 = vmax.f32 %v629, 0.0
        %v690 = vmax.f32 %v634, 0.0
        %v691 = vmax.f32 %v637, 0.0
        %v692 = vmax.f32 %v642, 0.0
        %v693 = vmax.f32 %v645, 0.0
        %v694 = vmax.f32 %v650, 0.0
        %v695 = vmax.f32 %v653, 0.0
        %v696 = vmax.f32 %v658, 0.0
        %v697 = vmax.f32 %v661, 0.0
        %v698 = vmax.f32 %v666, 0.0
        %v699 = vmax.f32 %v669, 0.0
        %v700 = vmax.f32 %v674, 0.0
        %v701 = vmax.f32 %v677, 0.0
        %v702 = vmax.f32 %v682, 0.0
        %v703 = vmax.f32 %v685, 0.0
        %v704 = vlaneseq
        %v705 = vshrl.u32 %v704, 7
        %v706 = vadd.s32 %v705, 8
        %v707 = vld [vmem:[%s342] sm:$0xff]
        %v708 = vcombine.high %v707, %v707
        %v710 = vunpack.c.l.s4 1966171168
        %v711 = vunpack.c.0.s8 %v710
        %v712 = vlaneseq
        %v713 = vshrl.u32 %v712, 7
        %v714 = vsub.s32 %v711, %v713
        %v715 = vrot.slane %v707, %v714
        %v717 = vunpack.c.l.s4 1966171168
        %v718 = vunpack.c.0.s8 %v717
        %v719 = vlaneseq
        %v720 = vshrl.u32 %v719, 7
        %v721 = vsub.s32 %v718, %v720
        %v722 = vrot.slane %v708, %v721
        %v723 = vcombine.high %v715, %v715
        %v724 = vcombine.high %v722, %v722
        %v726 = vunpack.c.l.s4 1966171168
        %v727 = vunpack.c.0.s8 %v726
        %v728 = vlaneseq
        %v729 = vshrl.u32 %v728, 7
        %v730 = vsub.s32 %v727, %v729
        %v731 = vrot.slane %v715, %v730
        %v733 = vunpack.c.l.s4 1966171168
        %v734 = vunpack.c.0.s8 %v733
        %v735 = vlaneseq
        %v736 = vshrl.u32 %v735, 7
        %v737 = vsub.s32 %v734, %v736
        %v738 = vrot.slane %v722, %v737
        %v740 = vunpack.c.l.s4 1966171168
        %v741 = vunpack.c.0.s8 %v740
        %v742 = vlaneseq
        %v743 = vshrl.u32 %v742, 7
        %v744 = vsub.s32 %v741, %v743
        %v745 = vrot.slane %v723, %v744
        %v747 = vunpack.c.l.s4 1966171168
        %v748 = vunpack.c.0.s8 %v747
        %v749 = vlaneseq
        %v750 = vshrl.u32 %v749, 7
        %v751 = vsub.s32 %v748, %v750
        %v752 = vrot.slane %v724, %v751
        %v753 = vcombine.high %v731, %v731
        %v754 = vcombine.high %v738, %v738
        %v755 = vcombine.high %v745, %v745
        %v756 = vcombine.high %v752, %v752
        %v757 = vlaneseq
        %v758 = vshrl.u32 %v757, 7
        %v759 = vsub.s32 0, %v758
        %v760 = vrot.slane %v731, %v759
        %v761 = vlaneseq
        %v762 = vshrl.u32 %v761, 7
        %v763 = vsub.s32 0, %v762
        %v764 = vrot.slane %v745, %v763
        %v765 = vlaneseq
        %v766 = vshrl.u32 %v765, 7
        %v767 = vsub.s32 0, %v766
        %v768 = vrot.slane %v753, %v767
        %v769 = vlaneseq
        %v770 = vshrl.u32 %v769, 7
        %v771 = vsub.s32 0, %v770
        %v772 = vrot.slane %v755, %v771
        %v773 = vlaneseq
        %v774 = vshrl.u32 %v773, 7
        %v775 = vsub.s32 0, %v774
        %v776 = vrot.slane %v738, %v775
        %v777 = vlaneseq
        %v778 = vshrl.u32 %v777, 7
        %v779 = vsub.s32 0, %v778
        %v780 = vrot.slane %v752, %v779
        %v781 = vlaneseq
        %v782 = vshrl.u32 %v781, 7
        %v783 = vsub.s32 0, %v782
        %v784 = vrot.slane %v754, %v783
        %v785 = vlaneseq
        %v786 = vshrl.u32 %v785, 7
        %v787 = vsub.s32 0, %v786
        %v788 = vrot.slane %v756, %v787
        %789 = vset.pattern.permute.xlu0 0
        %790 = vperm.xlu0 %789, %v760
        %v791 = vpop.permute.xlu0 %790
        %792 = vset.pattern.permute.xlu0 0
        %793 = vperm.xlu0 %792, %v764
        %v794 = vpop.permute.xlu0 %793
        %795 = vset.pattern.permute.xlu0 0
        %796 = vperm.xlu0 %795, %v768
        %v797 = vpop.permute.xlu0 %796
        %798 = vset.pattern.permute.xlu0 0
        %799 = vperm.xlu0 %798, %v772
        %v800 = vpop.permute.xlu0 %799
        %801 = vset.pattern.permute.xlu0 0
        %802 = vperm.xlu0 %801, %v776
        %v803 = vpop.permute.xlu0 %802
        %804 = vset.pattern.permute.xlu0 0
        %805 = vperm.xlu0 %804, %v780
        %v806 = vpop.permute.xlu0 %805
        %807 = vset.pattern.permute.xlu0 0
        %808 = vperm.xlu0 %807, %v784
        %v809 = vpop.permute.xlu0 %808
        %810 = vset.pattern.permute.xlu0 0
        %811 = vperm.xlu0 %810, %v788
        %v812 = vpop.permute.xlu0 %811
        %vm813 = vcmp.lt.s32.totalorder %v705, %v791
        %vm814 = vcmp.lt.s32.totalorder %v706, %v791
        %vm815 = vcmp.lt.s32.totalorder %v705, %v794
        %vm816 = vcmp.lt.s32.totalorder %v706, %v794
        %vm817 = vcmp.lt.s32.totalorder %v705, %v797
        %vm818 = vcmp.lt.s32.totalorder %v706, %v797
        %vm819 = vcmp.lt.s32.totalorder %v705, %v800
        %vm820 = vcmp.lt.s32.totalorder %v706, %v800
        %vm821 = vcmp.lt.s32.totalorder %v705, %v803
        %vm822 = vcmp.lt.s32.totalorder %v706, %v803
        %vm823 = vcmp.lt.s32.totalorder %v705, %v806
        %vm824 = vcmp.lt.s32.totalorder %v706, %v806
        %vm825 = vcmp.lt.s32.totalorder %v705, %v809
        %vm826 = vcmp.lt.s32.totalorder %v706, %v809
        %vm827 = vcmp.lt.s32.totalorder %v705, %v812
        %vm828 = vcmp.lt.s32.totalorder %v706, %v812
        %v829 = vsel %vm813, 1, 0
        %v830 = vsel %vm814, 1, 0
        %v831 = vsel %vm815, 1, 0
        %v832 = vsel %vm816, 1, 0
        %v833 = vsel %vm817, 1, 0
        %v834 = vsel %vm818, 1, 0
        %v835 = vsel %vm819, 1, 0
        %v836 = vsel %vm820, 1, 0
        %v837 = vsel %vm821, 1, 0
        %v838 = vsel %vm822, 1, 0
        %v839 = vsel %vm823, 1, 0
        %v840 = vsel %vm824, 1, 0
        %v841 = vsel %vm825, 1, 0
        %v842 = vsel %vm826, 1, 0
        %v843 = vsel %vm827, 1, 0
        %v844 = vsel %vm828, 1, 0
        %v845 = vcvt.s32.f32 %v829
        %v846 = vcvt.s32.f32 %v830
        %v847 = vcvt.s32.f32 %v831
        %v848 = vcvt.s32.f32 %v832
        %v849 = vcvt.s32.f32 %v833
        %v850 = vcvt.s32.f32 %v834
        %v851 = vcvt.s32.f32 %v835
        %v852 = vcvt.s32.f32 %v836
        %v853 = vcvt.s32.f32 %v837
        %v854 = vcvt.s32.f32 %v838
        %v855 = vcvt.s32.f32 %v839
        %v856 = vcvt.s32.f32 %v840
        %v857 = vcvt.s32.f32 %v841
        %v858 = vcvt.s32.f32 %v842
        %v859 = vcvt.s32.f32 %v843
        %v860 = vcvt.s32.f32 %v844
        %v861 = vmul.f32 %v688, %v845
        %v862 = vmul.f32 %v689, %v846
        %v863 = vmul.f32 %v690, %v847
        %v864 = vmul.f32 %v691, %v848
        %v865 = vmul.f32 %v692, %v849
        %v866 = vmul.f32 %v693, %v850
        %v867 = vmul.f32 %v694, %v851
        %v868 = vmul.f32 %v695, %v852
        %v869 = vmul.f32 %v696, %v853
        %v870 = vmul.f32 %v697, %v854
        %v871 = vmul.f32 %v698, %v855
        %v872 = vmul.f32 %v699, %v856
        %v873 = vmul.f32 %v700, %v857
        %v874 = vmul.f32 %v701, %v858
        %v875 = vmul.f32 %v702, %v859
        %v876 = vmul.f32 %v703, %v860
        %vm877 = vcmask 130048
        %v878 = vsel %vm877, %v861, 0.0
        %v879 = vsel %vm877, %v862, 0.0
        %v880 = vadd.f32 %v878, %v879
        %v881 = vrot.slane %v880, 4
        %v882 = vadd.f32 %v880, %v881
        %v883 = vrot.slane %v882, 2
        %v884 = vadd.f32 %v882, %v883
        %v885 = vrot.slane %v884, 1
        %v886 = vadd.f32 %v884, %v885
        %v887 = vsel %vm877, %v863, 0.0
        %v888 = vsel %vm877, %v864, 0.0
        %v889 = vadd.f32 %v887, %v888
        %v890 = vrot.slane %v889, 4
        %v891 = vadd.f32 %v889, %v890
        %v892 = vrot.slane %v891, 2
        %v893 = vadd.f32 %v891, %v892
        %v894 = vrot.slane %v893, 1
        %v895 = vadd.f32 %v893, %v894
        %v896 = vsel %vm877, %v865, 0.0
        %v897 = vsel %vm877, %v866, 0.0
        %v898 = vadd.f32 %v896, %v897
        %v899 = vrot.slane %v898, 4
        %v900 = vadd.f32 %v898, %v899
        %v901 = vrot.slane %v900, 2
        %v902 = vadd.f32 %v900, %v901
        %v903 = vrot.slane %v902, 1
        %v904 = vadd.f32 %v902, %v903
        %v905 = vsel %vm877, %v867, 0.0
        %v906 = vsel %vm877, %v868, 0.0
        %v907 = vadd.f32 %v905, %v906
        %v908 = vrot.slane %v907, 4
        %v909 = vadd.f32 %v907, %v908
        %v910 = vrot.slane %v909, 2
        %v911 = vadd.f32 %v909, %v910
        %v912 = vrot.slane %v911, 1
        %v913 = vadd.f32 %v911, %v912
        %v914 = vsel %vm877, %v869, 0.0
        %v915 = vsel %vm877, %v870, 0.0
        %v916 = vadd.f32 %v914, %v915
        %v917 = vrot.slane %v916, 4
        %v918 = vadd.f32 %v916, %v917
        %v919 = vrot.slane %v918, 2
        %v920 = vadd.f32 %v918, %v919
        %v921 = vrot.slane %v920, 1
        %v922 = vadd.f32 %v920, %v921
        %v923 = vsel %vm877, %v871, 0.0
        %v924 = vsel %vm877, %v872, 0.0
        %v925 = vadd.f32 %v923, %v924
        %v926 = vrot.slane %v925, 4
        %v927 = vadd.f32 %v925, %v926
        %v928 = vrot.slane %v927, 2
        %v929 = vadd.f32 %v927, %v928
        %v930 = vrot.slane %v929, 1
        %v931 = vadd.f32 %v929, %v930
        %v932 = vsel %vm877, %v873, 0.0
        %v933 = vsel %vm877, %v874, 0.0
        %v934 = vadd.f32 %v932, %v933
        %v935 = vrot.slane %v934, 4
        %v936 = vadd.f32 %v934, %v935
        %v937 = vrot.slane %v936, 2
        %v938 = vadd.f32 %v936, %v937
        %v939 = vrot.slane %v938, 1
        %v940 = vadd.f32 %v938, %v939
        %v941 = vsel %vm877, %v875, 0.0
        %v942 = vsel %vm877, %v876, 0.0
        %v943 = vadd.f32 %v941, %v942
        %v944 = vrot.slane %v943, 4
        %v945 = vadd.f32 %v943, %v944
        %v946 = vrot.slane %v945, 2
        %v947 = vadd.f32 %v945, %v946
        %v948 = vrot.slane %v947, 1
        %v949 = vadd.f32 %v947, %v948
        %v950 = vcvt.s32.f32 %v707
        %vm951 = vcmp.gt.f32.partialorder %v950, 0.0
        %v952 = vmax.f32 %v950, 1.0
        %v953 = vrcp.pop %v952
        %v954 = vsel %vm951, %v953, 0.0
        %956 = vset.pattern.permute.xlu0 0
        %957 = vperm.xlu0 %956, %v954
        %v958 = vpop.permute.xlu0 %957
        %v959 = vrot.slane %v958, 1
        %v960 = vrot.slane %v958, 2
        %v961 = vrot.slane %v958, 3
        %v962 = vrot.slane %v958, 4
        %v963 = vrot.slane %v958, 5
        %v964 = vrot.slane %v958, 6
        %v965 = vrot.slane %v958, 7
        %v974 = vmul.f32 %v886, %v958
        %v975 = vmul.f32 %v895, %v959
        %v976 = vmul.f32 %v904, %v960
        %v977 = vmul.f32 %v913, %v961
        %v978 = vmul.f32 %v922, %v962
        %v979 = vmul.f32 %v931, %v963
        %v980 = vmul.f32 %v940, %v964
        %v981 = vmul.f32 %v949, %v965
        %v982 = vpack.c.bf16 %v974, %v974
        %v983 = vpack.c.bf16 %v975, %v975
        %v984 = vpack.c.bf16 %v976, %v976
        %v985 = vpack.c.bf16 %v977, %v977
        %v986 = vpack.c.bf16 %v978, %v978
        %v987 = vpack.c.bf16 %v979, %v979
        %v988 = vpack.c.bf16 %v980, %v980
        %v989 = vpack.c.bf16 %v981, %v981
        %v990 = vld [vmem:[%s6] sm:$0xf]
        %v991 = vld [vmem:[%s6 + $0x4] sm:$0xf]
        %v992 = vld [vmem:[%s7] sm:$0x1]
        %v994 = vlaneseq
        %v995 = vshrl.u32 %v994, 7
        %v996 = vsub.s32 0, %v995
        %v997 = vrot.slane %v992, %v996
        %v1007 = vunpack.c.l.b16 %v982
        %v1008 = vunpack.c.l.b16 %v983
        %v1009 = vunpack.c.l.b16 %v984
        %v1010 = vunpack.c.l.b16 %v985
        %v1011 = vunpack.c.l.b16 %v986
        %v1012 = vunpack.c.l.b16 %v987
        %v1013 = vunpack.c.l.b16 %v988
        %v1014 = vunpack.c.l.b16 %v989
        %v1015 = vrot.slane %v1008, 7
        %vm1016 = vcmask 1041409
        %v1017 = vsel %vm1016, %v1015, %v1007
        %v1018 = vrot.slane %v1009, 6
        %vm1019 = vcmask 1042434
        %v1020 = vsel %vm1019, %v1018, %v1017
        %v1021 = vrot.slane %v1010, 5
        %vm1022 = vcmask 1043459
        %v1023 = vsel %vm1022, %v1021, %v1020
        %v1024 = vrot.slane %v1011, 4
        %vm1025 = vcmask 1044484
        %v1026 = vsel %vm1025, %v1024, %v1023
        %v1027 = vrot.slane %v1012, 3
        %vm1028 = vcmask 1045509
        %v1029 = vsel %vm1028, %v1027, %v1026
        %v1030 = vrot.slane %v1013, 2
        %vm1031 = vcmask 1046534
        %v1032 = vsel %vm1031, %v1030, %v1029
        %v1033 = vrot.slane %v1014, 1
        %vm1034 = vcmask 1047559
        %v1035 = vsel %vm1034, %v1033, %v1032
        %v1036 = vpack.c.b16 %v1035, %v1035
        %v1039 = vunpack.c.l.b16 %v990
        %v1040 = vunpack.c.l.b16 %v991
        %v1041 = vpack.c.b16 %v1040, %v1039
        %v1044 = vsel %vm877, %v1036, 0
        %1046 = vmatprep.subr.bf16.mxu0 0
        %1047 = vmatpush1.bf16.msra.mxu0 %v1041
        %1048 = vmatprep.subr.bf16.mxu0 0
        %1049 = vmatpush1.bf16.msra.mxu0 0
        %1050 = vmatprep.subr.bf16.mxu0 0
        %1051 = vmatpush1.bf16.msra.mxu0 0
        %1052 = vmatprep.subr.bf16.mxu0 0
        %1053 = vmatpush1.bf16.msra.mxu0 0
        %1054 = vmatprep.subr.bf16.mxu0 0
        %1055 = vmatpush1.bf16.msra.mxu0 0
        %1056 = vmatprep.subr.bf16.mxu0 0
        %1057 = vmatpush1.bf16.msra.mxu0 0
        %1058 = vmatprep.subr.bf16.mxu0 0
        %1059 = vmatpush1.bf16.msra.mxu0 0
        %1060 = vmatprep.subr.bf16.mxu0 0
        %1061 = vmatpush1.bf16.msra.mxu0 0
        %1062 = vmatprep.subr.bf16.mxu0 0
        %1063 = vmatpush1.bf16.msra.mxu0 0
        %1064 = vmatprep.subr.bf16.mxu0 0
        %1065 = vmatpush1.bf16.msra.mxu0 0
        %1066 = vmatprep.subr.bf16.mxu0 0
        %1067 = vmatpush1.bf16.msra.mxu0 0
        %1068 = vmatprep.subr.bf16.mxu0 0
        %1069 = vmatpush1.bf16.msra.mxu0 0
        %1070 = vmatprep.subr.bf16.mxu0 0
        %1071 = vmatpush1.bf16.msra.mxu0 0
        %1072 = vmatprep.subr.bf16.mxu0 0
        %1073 = vmatpush1.bf16.msra.mxu0 0
        %1074 = vmatprep.subr.bf16.mxu0 0
        %1075 = vmatpush1.bf16.msra.mxu0 0
        %1076 = vmatprep.subr.bf16.mxu0 0
        %1077 = vmatpush1.bf16.msra.mxu0 0
        %1078 = vmatprep.mubr.bf16.mxu0 0
        %1079 = vmatmul.mubr.bf16.gmra.mrb[0].mxu0 %v1044
        %v1080 = vpop.f32.mrb[0].mxu0
        %v1081 = vadd.f32 %v997, %v1080
        %v1082 = vpop.f32.mrb[0].mxu0
        %v1083 = vpop.f32.mrb[0].mxu0
        %v1084 = vpop.f32.mrb[0].mxu0
        %1085 = vdwg.mxu0
        %1086 = vst [vmem:[%s337] sm:$0xff] %v1081
        %s1087 = sand.u32 %s211, 1
        %s1088 = scalar_lea.sflag [#allocation4], %s1087
        %s1089 = sand.u32 %s211, 1
        %s1090 = smul.addr %s1089, 8
        %s1091 = scalar_lea.vmem [#allocation5], %s1090
        // Predicated region
        $region57: #{tpu_custom_call.1} parent=51 // pred_check
          %p1092 = pneg %p221
        $region58: #{tpu_custom_call.1} parent=51 // pred_check_branch
          %1094 = sbr.rel (%p1092) target = $region60
        $region59: #{tpu_custom_call.1} parent=51 // pred_region
          %s1096 = ssub.s32 128, 128
          %1097 = vsyncadd %s1088, %s1096
          %s1098 = smul.addr %s25, 128
          %s1099 = scalar_lea.hbm %s8, %s1098
          %s1101 = sshll.u32 %s1091, 4
          %s1102 = int_to_ptr.vmem [resolvable:$true] %s1101
          %1104 = dma.vmem_to_hbm [thread:$0]  %s1102, 128, %s1099, %s1088
        $region60: #{tpu_custom_call.1} parent=51 // pred_fallthru
          _
      $region52: #{tpu_custom_call.1} parent=5 // pred_fallthru
        _
      %p1105 = scmp.le.s32.totalorder 2, %s20
      // Predicated region
      $region61: #{tpu_custom_call.1} parent=5 // pred_check
        %p1106 = pneg %p1105
      $region62: #{tpu_custom_call.1} parent=5 // pred_check_branch
        %1108 = sbr.rel (%p1106) target = $region64
      $region63: #{tpu_custom_call.1} parent=5 // pred_region
        %s1109 = ssub.s32 %s20, 2
        // Predicated region
        $region65: #{tpu_custom_call.1} parent=63 // pred_check
          %p1110 = pneg %p227
        $region66: #{tpu_custom_call.1} parent=63 // pred_check_branch
          %1112 = sbr.rel (%p1110) target = $region68
        $region67: #{tpu_custom_call.1} parent=63 // pred_region
          %s1113 = sand.u32 %s212, 1
          %s1114 = scalar_lea.sflag [#allocation4], %s1113
          %s1115 = sand.u32 %s212, 1
          %s1116 = smul.addr %s1115, 8
          %s1117 = scalar_lea.vmem [#allocation5], %s1116
          %1118 = dma.done %s1114, 128
        $region68: #{tpu_custom_call.1} parent=63 // pred_fallthru
          _
      $region64: #{tpu_custom_call.1} parent=5 // pred_fallthru
        _
    $region6: #{tpu_custom_call.1} parent=1 // loop_footer
      %s24 = sadd.s32 1, %s20
    $region7: #{tpu_custom_call.1} parent=1 // loop_footer_branch
      %19 = sbr.rel target = $region3
    $region8: #{tpu_custom_call.1} parent=1 // loop_exit
      _
    %1119 = vsyncpa [#allocation3], 1
    %s1120 = scalar_lea.sflag [#allocation3], 1
    %1121 = vsyncpa %s1120, 1
    %1122 = vsyncpa [#allocation4], 1
    %s1123 = scalar_lea.sflag [#allocation4], 1
    %1124 = vsyncpa %s1123, 1

</llo_original>
